<compile_context>
chip_gen: v7x
topology: tpu7x:2x2x1
jax: 0.10.0
libtpu: 0.0.40
codegen_flags: <defaults>
</compile_context>

<pallas_src>
import functools

import jax
import jax.numpy as jnp
from jax.experimental import pallas as pl
from jax.experimental.pallas import tpu as pltpu

_LANES = 128
_SUBLANES = 8


def _wbce_kernel(x_ref, t_ref, out_ref, p_acc, tlog_acc, s_acc,
                 *, total_valid, num_pad, batch_n):
    i = pl.program_id(0)

    @pl.when(i == 0)
    def _():
        p_acc[...] = jnp.zeros_like(p_acc)
        tlog_acc[...] = jnp.zeros_like(tlog_acc)
        s_acc[...] = jnp.zeros_like(s_acc)

    x = x_ref[...].astype(jnp.float32)       # (T, 128) probabilities in (0, 1)
    t = t_ref[...].astype(jnp.float32)       # (T, 128) binary {0., 1.}

    # Single EUP log per element (instead of log(x) AND log(1-x)).
    pos = t == 1.0
    y = jnp.where(pos, x, 1.0 - x)
    log_y = jnp.log(y)

    p_acc[...] += jnp.sum(t, keepdims=True)              # running positive count
    tlog_acc[...] += jnp.sum(t * log_y, keepdims=True)   # sum over positives of log(x)
    s_acc[...] += jnp.sum(log_y, keepdims=True)          # sum over all of log_y

    @pl.when(i == pl.num_programs(0) - 1)
    def _():
        # Padding uses (x=1, t=1): zero log contribution, but counts as a
        # positive -> subtract the static pad count here.
        P = p_acc[...] - jnp.float32(num_pad)
        N = jnp.float32(total_valid) - P
        pos_sum = -tlog_acc[...]
        neg_sum = tlog_acc[...] - s_acc[...]
        tot = jnp.float32(total_valid)
        beta_p = tot / P
        beta_n = tot / N
        out_ref[...] = (beta_p * pos_sum + beta_n * neg_sum) / jnp.float32(batch_n)


def weighted_bce(inputs, targets, *, max_tile_rows=1024):
    """inputs, targets: (n, C); inputs are probabilities in (0,1), targets binary.

    Returns the scalar float32 weighted-BCE loss (matches the PyTorch module).
    """
    n, c = inputs.shape
    total = n * c

    # Lane-dense layout: flatten + pad to a (rows, 128) slab with rows % 8 == 0
    # and rows a multiple of the tile height.
    rows = pl.cdiv(total, _LANES)
    rows = pl.cdiv(rows, _SUBLANES) * _SUBLANES
    tile_rows = min(max_tile_rows, rows)
    rows = pl.cdiv(rows, tile_rows) * tile_rows
    pad = rows * _LANES - total

    # Keep inputs in their natural dtype (upcast inside the kernel); ship the
    # binary targets as bf16 to halve that HBM stream.  Pad with (1, 1).
    x_flat = jnp.pad(inputs.reshape(-1), (0, pad), constant_values=1)
    t_flat = jnp.pad(targets.reshape(-1).astype(jnp.bfloat16), (0, pad),
                     constant_values=1)
    x2 = x_flat.reshape(rows, _LANES)
    t2 = t_flat.reshape(rows, _LANES)

    kernel = functools.partial(_wbce_kernel, total_valid=total, num_pad=pad,
                               batch_n=n)

    out = pl.pallas_call(
        kernel,
        out_shape=jax.ShapeDtypeStruct((1, 1), jnp.float32),
        grid_spec=pltpu.PrefetchScalarGridSpec(
            num_scalar_prefetch=0,
            grid=(rows // tile_rows,),
            in_specs=[
                pl.BlockSpec((tile_rows, _LANES), lambda i: (i, 0)),
                pl.BlockSpec((tile_rows, _LANES), lambda i: (i, 0)),
            ],
            out_specs=pl.BlockSpec((1, 1), lambda i: (0, 0)),
            scratch_shapes=[pltpu.VMEM((1, 1), jnp.float32)] * 3,
        ),
        compiler_params=pltpu.CompilerParams(
            dimension_semantics=("arbitrary",),   # grid axis carries the reduction
            vmem_limit_bytes=32 * 1024 * 1024,
        ),
    )(x2, t2)
    return out[0, 0]


def _reference(inputs, targets):
    # Pure-JAX reference with identical semantics to the PyTorch double loop.
    pos = targets == 1.0
    posf = pos.astype(jnp.float32)
    P = jnp.sum(posf)
    N = jnp.sum(1.0 - posf)
    pos_sum = -jnp.sum(jnp.where(pos, jnp.log(inputs), 0.0))
    neg_sum = -jnp.sum(jnp.where(pos, 0.0, jnp.log(1.0 - inputs)))
    beta_p = (P + N) / P
    beta_n = (P + N) / N
    return (beta_p * pos_sum + beta_n * neg_sum) / targets.shape[0]


if __name__ == "__main__":
    key = jax.random.PRNGKey(0)
    k1, k2, k3, k4 = jax.random.split(key, 4)

    # Small shape consistent with the module's (batch, num_classes) inputs.
    n, num_classes = 8, 16
    inputs = jax.nn.sigmoid(jax.random.normal(k1, (n, num_classes), jnp.float32))
    targets = jax.random.bernoulli(k2, 0.3, (n, num_classes)).astype(jnp.float32)
    targets = targets.at[0, 0].set(1.0).at[0, 1].set(0.0)  # ensure P > 0 and N > 0

    loss = jax.block_until_ready(weighted_bce(inputs, targets))
    ref = _reference(inputs, targets)
    assert jnp.allclose(loss, ref, rtol=1e-5, atol=1e-5), (loss, ref)

    # Second case: exercises the multi-step grid accumulation and ragged padding.
    n2, c2 = 64, 33
    inputs2 = jax.nn.sigmoid(jax.random.normal(k3, (n2, c2), jnp.float32))
    targets2 = jax.random.bernoulli(k4, 0.4, (n2, c2)).astype(jnp.float32)
    targets2 = targets2.at[0, 0].set(1.0).at[0, 1].set(0.0)

    loss2 = jax.block_until_ready(weighted_bce(inputs2, targets2, max_tile_rows=8))
    ref2 = _reference(inputs2, targets2)
    assert jnp.allclose(loss2, ref2, rtol=1e-4, atol=1e-4), (loss2, ref2)

    print("KERNEL_OK")
</pallas_src>

<mosaic_0001>
module attributes {stable_mosaic.version = 11 : i64} {
  func.func @_wbce_kernel(%arg0: i32, %arg1: memref<8x128xf32, #tpu.memory_space<vmem>>, %arg2: memref<8x128xbf16, #tpu.memory_space<vmem>>, %arg3: memref<1x1xf32, #tpu.memory_space<vmem>>, %arg4: memref<1x1xf32, #tpu.memory_space<vmem>>, %arg5: memref<1x1xf32, #tpu.memory_space<vmem>>, %arg6: memref<1x1xf32, #tpu.memory_space<vmem>>) attributes {dimension_semantics = [#tpu.dimension_semantics<arbitrary>], iteration_bounds = array<i64: 1>, scalar_prefetch = 0 : i64, scratch_operands = 3 : i64, tpu.core_type = #tpu.core_type<tc>, window_params = [{transform_indices = @transform_0, window_bounds = array<i64: 8, 128>}, {transform_indices = @transform_1, window_bounds = array<i64: 8, 128>}, {pipeline_mode = #tpu.pipeline_mode<synchronous>, transform_indices = @transform_2, window_bounds = array<i64: 1, 1>}]} {
    %c0_i32 = arith.constant 0 : i32
    %0 = arith.cmpi eq, %arg0, %c0_i32 : i32
    %1 = arith.extui %0 : i1 to i32
    %c0_i32_0 = arith.constant 0 : i32
    %2 = arith.cmpi ne, %1, %c0_i32_0 : i32
    scf.if %2 {
      %cst_22 = arith.constant 0.000000e+00 : f32
      %40 = vector.broadcast %cst_22 : f32 to vector<1x1xf32>
      %c0_23 = arith.constant 0 : index
      %c0_24 = arith.constant 0 : index
      %41 = vector.load %arg4[%c0_23, %c0_24] : memref<1x1xf32, #tpu.memory_space<vmem>>, vector<1x1xf32>
      tpu.vector_store %arg4[%c0_23, %c0_24], %40 {strides = array<i32>} : memref<1x1xf32, #tpu.memory_space<vmem>>, vector<1x1xf32>,
      %cst_25 = arith.constant 0.000000e+00 : f32
      %42 = vector.broadcast %cst_25 : f32 to vector<1x1xf32>
      %c0_26 = arith.constant 0 : index
      %c0_27 = arith.constant 0 : index
      %43 = vector.load %arg5[%c0_26, %c0_27] : memref<1x1xf32, #tpu.memory_space<vmem>>, vector<1x1xf32>
      tpu.vector_store %arg5[%c0_26, %c0_27], %42 {strides = array<i32>} : memref<1x1xf32, #tpu.memory_space<vmem>>, vector<1x1xf32>,
      %cst_28 = arith.constant 0.000000e+00 : f32
      %44 = vector.broadcast %cst_28 : f32 to vector<1x1xf32>
      %c0_29 = arith.constant 0 : index
      %c0_30 = arith.constant 0 : index
      %45 = vector.load %arg6[%c0_29, %c0_30] : memref<1x1xf32, #tpu.memory_space<vmem>>, vector<1x1xf32>
      tpu.vector_store %arg6[%c0_29, %c0_30], %44 {strides = array<i32>} : memref<1x1xf32, #tpu.memory_space<vmem>>, vector<1x1xf32>,
    } else {
    }
    %c0 = arith.constant 0 : index
    %c0_1 = arith.constant 0 : index
    %3 = vector.load %arg1[%c0, %c0_1] : memref<8x128xf32, #tpu.memory_space<vmem>>, vector<8x128xf32>
    %c0_2 = arith.constant 0 : index
    %c0_3 = arith.constant 0 : index
    %4 = vector.load %arg2[%c0_2, %c0_3] : memref<8x128xbf16, #tpu.memory_space<vmem>>, vector<8x128xbf16>
    %5 = arith.extf %4 : vector<8x128xbf16> to vector<8x128xf32>
    %cst = arith.constant 1.000000e+00 : f32
    %6 = vector.broadcast %cst : f32 to vector<8x128xf32>
    %7 = arith.cmpf oeq, %5, %6 : vector<8x128xf32>
    %cst_4 = arith.constant 1.000000e+00 : f32
    %8 = vector.broadcast %cst_4 : f32 to vector<8x128xf32>
    %9 = arith.subf %8, %3 : vector<8x128xf32>
    %10 = arith.select %7, %3, %9 : vector<8x128xi1>, vector<8x128xf32>
    %11 = math.log %10 : vector<8x128xf32>
    %c0_5 = arith.constant 0 : index
    %c0_6 = arith.constant 0 : index
    %12 = vector.load %arg4[%c0_5, %c0_6] : memref<1x1xf32, #tpu.memory_space<vmem>>, vector<1x1xf32>
    %13 = vector.shape_cast %5 : vector<8x128xf32> to vector<1x8x128xf32>
    %cst_7 = arith.constant dense<0.000000e+00> : vector<1xf32>
    %14 = vector.multi_reduction <add>, %13, %cst_7 [1, 2] : vector<1x8x128xf32> to vector<1xf32>
    %15 = vector.shape_cast %14 : vector<1xf32> to vector<1x1x1xf32>
    %16 = vector.extract %15[0, 0, 0] : f32 from vector<1x1x1xf32>
    %17 = vector.broadcast %16 : f32 to vector<1x1xf32>
    %18 = arith.addf %12, %17 : vector<1x1xf32>
    %c0_8 = arith.constant 0 : index
    %c0_9 = arith.constant 0 : index
    %19 = vector.load %arg4[%c0_8, %c0_9] : memref<1x1xf32, #tpu.memory_space<vmem>>, vector<1x1xf32>
    tpu.vector_store %arg4[%c0_8, %c0_9], %18 {strides = array<i32>} : memref<1x1xf32, #tpu.memory_space<vmem>>, vector<1x1xf32>,
    %c0_10 = arith.constant 0 : index
    %c0_11 = arith.constant 0 : index
    %20 = vector.load %arg5[%c0_10, %c0_11] : memref<1x1xf32, #tpu.memory_space<vmem>>, vector<1x1xf32>
    %21 = arith.mulf %5, %11 : vector<8x128xf32>
    %22 = vector.shape_cast %21 : vector<8x128xf32> to vector<1x8x128xf32>
    %cst_12 = arith.constant dense<0.000000e+00> : vector<1xf32>
    %23 = vector.multi_reduction <add>, %22, %cst_12 [1, 2] : vector<1x8x128xf32> to vector<1xf32>
    %24 = vector.shape_cast %23 : vector<1xf32> to vector<1x1x1xf32>
    %25 = vector.extract %24[0, 0, 0] : f32 from vector<1x1x1xf32>
    %26 = vector.broadcast %25 : f32 to vector<1x1xf32>
    %27 = arith.addf %20, %26 : vector<1x1xf32>
    %c0_13 = arith.constant 0 : index
    %c0_14 = arith.constant 0 : index
    %28 = vector.load %arg5[%c0_13, %c0_14] : memref<1x1xf32, #tpu.memory_space<vmem>>, vector<1x1xf32>
    tpu.vector_store %arg5[%c0_13, %c0_14], %27 {strides = array<i32>} : memref<1x1xf32, #tpu.memory_space<vmem>>, vector<1x1xf32>,
    %c0_15 = arith.constant 0 : index
    %c0_16 = arith.constant 0 : index
    %29 = vector.load %arg6[%c0_15, %c0_16] : memref<1x1xf32, #tpu.memory_space<vmem>>, vector<1x1xf32>
    %30 = vector.shape_cast %11 : vector<8x128xf32> to vector<1x8x128xf32>
    %cst_17 = arith.constant dense<0.000000e+00> : vector<1xf32>
    %31 = vector.multi_reduction <add>, %30, %cst_17 [1, 2] : vector<1x8x128xf32> to vector<1xf32>
    %32 = vector.shape_cast %31 : vector<1xf32> to vector<1x1x1xf32>
    %33 = vector.extract %32[0, 0, 0] : f32 from vector<1x1x1xf32>
    %34 = vector.broadcast %33 : f32 to vector<1x1xf32>
    %35 = arith.addf %29, %34 : vector<1x1xf32>
    %c0_18 = arith.constant 0 : index
    %c0_19 = arith.constant 0 : index
    %36 = vector.load %arg6[%c0_18, %c0_19] : memref<1x1xf32, #tpu.memory_space<vmem>>, vector<1x1xf32>
    tpu.vector_store %arg6[%c0_18, %c0_19], %35 {strides = array<i32>} : memref<1x1xf32, #tpu.memory_space<vmem>>, vector<1x1xf32>,
    %c0_i32_20 = arith.constant 0 : i32
    %37 = arith.cmpi eq, %arg0, %c0_i32_20 : i32
    %38 = arith.extui %37 : i1 to i32
    %c0_i32_21 = arith.constant 0 : i32
    %39 = arith.cmpi ne, %38, %c0_i32_21 : i32
    scf.if %39 {
      %c0_22 = arith.constant 0 : index
      %c0_23 = arith.constant 0 : index
      %40 = vector.load %arg4[%c0_22, %c0_23] : memref<1x1xf32, #tpu.memory_space<vmem>>, vector<1x1xf32>
      %cst_24 = arith.constant 8.960000e+02 : f32
      %41 = vector.broadcast %cst_24 : f32 to vector<1x1xf32>
      %42 = arith.subf %40, %41 : vector<1x1xf32>
      %cst_25 = arith.constant 1.280000e+02 : f32
      %43 = vector.broadcast %cst_25 : f32 to vector<1x1xf32>
      %44 = arith.subf %43, %42 : vector<1x1xf32>
      %c0_26 = arith.constant 0 : index
      %c0_27 = arith.constant 0 : index
      %45 = vector.load %arg5[%c0_26, %c0_27] : memref<1x1xf32, #tpu.memory_space<vmem>>, vector<1x1xf32>
      %cst_28 = arith.constant 0.000000e+00 : f32
      %46 = vector.broadcast %cst_28 : f32 to vector<1x1xf32>
      %47 = arith.subf %46, %45 : vector<1x1xf32>
      %c0_29 = arith.constant 0 : index
      %c0_30 = arith.constant 0 : index
      %48 = vector.load %arg5[%c0_29, %c0_30] : memref<1x1xf32, #tpu.memory_space<vmem>>, vector<1x1xf32>
      %c0_31 = arith.constant 0 : index
      %c0_32 = arith.constant 0 : index
      %49 = vector.load %arg6[%c0_31, %c0_32] : memref<1x1xf32, #tpu.memory_space<vmem>>, vector<1x1xf32>
      %50 = arith.subf %48, %49 : vector<1x1xf32>
      %cst_33 = arith.constant 1.280000e+02 : f32
      %51 = vector.broadcast %cst_33 : f32 to vector<1x1xf32>
      %52 = arith.divf %51, %42 : vector<1x1xf32>
      %cst_34 = arith.constant 1.280000e+02 : f32
      %53 = vector.broadcast %cst_34 : f32 to vector<1x1xf32>
      %54 = arith.divf %53, %44 : vector<1x1xf32>
      %55 = arith.mulf %52, %47 : vector<1x1xf32>
      %56 = arith.mulf %54, %50 : vector<1x1xf32>
      %57 = arith.addf %55, %56 : vector<1x1xf32>
      %cst_35 = arith.constant 8.000000e+00 : f32
      %58 = vector.broadcast %cst_35 : f32 to vector<1x1xf32>
      %59 = arith.divf %57, %58 : vector<1x1xf32>
      %c0_36 = arith.constant 0 : index
      %c0_37 = arith.constant 0 : index
      %60 = vector.load %arg3[%c0_36, %c0_37] : memref<1x1xf32, #tpu.memory_space<vmem>>, vector<1x1xf32>
      tpu.vector_store %arg3[%c0_36, %c0_37], %59 {strides = array<i32>} : memref<1x1xf32, #tpu.memory_space<vmem>>, vector<1x1xf32>,
    } else {
    }
    return
  }
  func.func @transform_0(%arg0: i32) -> (i32, i32) {
    %c0_i32 = arith.constant 0 : i32
    %c0_i32_0 = arith.constant 0 : i32
    return %arg0, %c0_i32 : i32, i32
  }
  func.func @transform_1(%arg0: i32) -> (i32, i32) {
    %c0_i32 = arith.constant 0 : i32
    %c0_i32_0 = arith.constant 0 : i32
    return %arg0, %c0_i32 : i32, i32
  }
  func.func @transform_2(%arg0: i32) -> (i32, i32) {
    %c0_i32 = arith.constant 0 : i32
    %c0_i32_0 = arith.constant 0 : i32
    %c0_i32_1 = arith.constant 0 : i32
    return %c0_i32, %c0_i32_0 : i32, i32
  }
}

</mosaic_0001>

<llo_original>
// kernel: tpu_custom_call.1
$region0: #{tpu_custom_call.1}
  #allocation0 [shape = 'u32[]', space=smem, size = 0x4, offset = 0x4, fixed_abs, tag = 'smem constant byte address 0x4 - core index']
  #allocation1 [shape = 'u32[144,128]{1,0:T(1,128)}', space=vmem, size = 0x12000, scoped, tag = 'internal scratch']
  #allocation2 [shape = 'f32[1,1]{1,0:T(1,128)}', space=vmem, size = 0x200, scoped, tag = 'scratch operand']
  #allocation3 [shape = 'f32[1,1]{1,0:T(1,128)}', space=vmem, size = 0x200, scoped, tag = 'scratch operand']
  #allocation4 [shape = 'f32[1,1]{1,0:T(1,128)}', space=vmem, size = 0x200, scoped, tag = 'scratch operand']
  %s0 = inlined_call_operand.hbm [shape: f32[8,128], index: 0, kind: input, shape index: {}]
  %s1 = inlined_call_operand.hbm [shape: bf16[8,128], index: 1, kind: input, shape index: {}]
  %s2 = inlined_call_operand.hbm [shape: f32[1,1], index: 2, kind: output, shape index: {}]
  %s3 = sld [smem:[#allocation0]]
  $region34: #{tpu_custom_call.1} parent=0
    _
  %s5 = ssub.s32 1, %s3
  %s6 = scalar_select 0, %s5, %s3
  $region1: #{tpu_custom_call.1} parent=0
    #allocation5 [shape = 'u8[4096]{0}', space=vmem, size = 0x1000, scoped, tag = 'input window, operand 0, single buffered']
    #allocation6 [shape = 's32[1]{0}', space=sflag, size = 0x4, scoped, tag = 'scoped memory for tpu_custom_call.1']
    #allocation7 [shape = 's32[1]{0}', space=sflag, size = 0x4, scoped, tag = 'scoped memory for tpu_custom_call.1']
    #allocation8 [shape = 'u8[2048]{0}', space=vmem, size = 0x800, scoped, tag = 'input window, operand 1, single buffered']
    #allocation9 [shape = 's32[1]{0}', space=sflag, size = 0x4, scoped, tag = 'scoped memory for tpu_custom_call.1']
    #allocation10 [shape = 'u8[512]{0}', space=vmem, size = 0x400, scoped, tag = 'output window, operand 0, single buffered']
    %7 = vsyncpa [#allocation6], 0
    %8 = vsyncpa [#allocation9], 0
    %9 = vsyncpa [#allocation7], 0
    // Predicated region
    $region2: #{tpu_custom_call.1} parent=1 // pred_check
      _
    $region3: #{tpu_custom_call.1} parent=1 // pred_check_branch
      %11 = sbr.rel (0) target = $region5
    $region4: #{tpu_custom_call.1} parent=1 // pred_region
      %s13 = ssub.s32 128, 128
      %14 = vsyncadd [#allocation6], %s13
      %s16 = sshll.u32 [#allocation5], 4
      %s17 = int_to_ptr.vmem [resolvable:$true] %s16
      %19 = dma.hbm_to_vmem [thread:$0]  %s0, 128, %s17, [#allocation6]
    $region5: #{tpu_custom_call.1} parent=1 // pred_fallthru
      _
    // Predicated region
    $region6: #{tpu_custom_call.1} parent=1 // pred_check
      _
    $region7: #{tpu_custom_call.1} parent=1 // pred_check_branch
      %21 = sbr.rel (0) target = $region9
    $region8: #{tpu_custom_call.1} parent=1 // pred_region
      %s23 = ssub.s32 64, 64
      %24 = vsyncadd [#allocation9], %s23
      %s26 = sshll.u32 [#allocation8], 4
      %s27 = int_to_ptr.vmem [resolvable:$true] %s26
      %29 = dma.hbm_to_vmem [thread:$0]  %s1, 64, %s27, [#allocation9]
    $region9: #{tpu_custom_call.1} parent=1 // pred_fallthru
      _
    // Predicated region
    $region10: #{tpu_custom_call.1} parent=1 // pred_check
      _
    $region11: #{tpu_custom_call.1} parent=1 // pred_check_branch
      %31 = sbr.rel (0) target = $region13
    $region12: #{tpu_custom_call.1} parent=1 // pred_region
      %32 = dma.done [#allocation6], 128
    $region13: #{tpu_custom_call.1} parent=1 // pred_fallthru
      _
    // Predicated region
    $region14: #{tpu_custom_call.1} parent=1 // pred_check
      _
    $region15: #{tpu_custom_call.1} parent=1 // pred_check_branch
      %34 = sbr.rel (0) target = $region17
    $region16: #{tpu_custom_call.1} parent=1 // pred_region
      %35 = dma.done [#allocation9], 64
    $region17: #{tpu_custom_call.1} parent=1 // pred_fallthru
      _
    %p36 = scmp.eq.s32.totalorder 0, 0
    // Predicated region
    $region18: #{tpu_custom_call.1} parent=1 // pred_check
      %p37 = pneg %p36
    $region19: #{tpu_custom_call.1} parent=1 // pred_check_branch
      %39 = sbr.rel (%p37) target = $region21
    $region20: #{tpu_custom_call.1} parent=1 // pred_region
      %vm40 = vcmask 0
      %41 = vst.msk [vmem:[#allocation2] sm:$0x1] %vm40, 0.0
      %42 = vst.msk [vmem:[#allocation3] sm:$0x1] %vm40, 0.0
      %43 = vst.msk [vmem:[#allocation4] sm:$0x1] %vm40, 0.0
    $region21: #{tpu_custom_call.1} parent=1 // pred_fallthru
      _
    %v44 = vld [vmem:[#allocation5] sm:$0xff]
    %v45 = vld [vmem:[#allocation8] sm:$0xf]
    %v46 = vunpack.c.l.bf16 %v45
    %vm47 = vcmp.eq.f32.partialorder %v46, 1.0
    %v48 = vsub.f32 1.0, %v44
    %v49 = vsel %vm47, %v44, %v48
    %v50 = vlog2.pop %v49
    %v51 = vmul.f32 %v50, 0.6931472
    %v52 = vld [vmem:[#allocation2] sm:$0x1]
    %53 = vadd.xlane.f32.xlu0 %v46
    %v54 = vpop.xlane.xlu0 %53
    %v55 = vrot.slane %v54, 4
    %v56 = vadd.f32 %v54, %v55
    %v57 = vrot.slane %v56, 2
    %v58 = vadd.f32 %v56, %v57
    %v59 = vrot.slane %v58, 1
    %v60 = vadd.f32 %v58, %v59
    %s61 = vtos %v60
    %v62 = vstv %s61
    %v63 = vadd.f32 %v52, %v62
    %vm64 = vcmask 0
    %65 = vst.msk [vmem:[#allocation2] sm:$0x1] %vm64, %v63
    %v66 = vld [vmem:[#allocation3] sm:$0x1]
    %v67 = vmul.f32 %v46, %v51
    %68 = vadd.xlane.f32.xlu0 %v67
    %v69 = vpop.xlane.xlu0 %68
    %v70 = vrot.slane %v69, 4
    %v71 = vadd.f32 %v69, %v70
    %v72 = vrot.slane %v71, 2
    %v73 = vadd.f32 %v71, %v72
    %v74 = vrot.slane %v73, 1
    %v75 = vadd.f32 %v73, %v74
    %s76 = vtos %v75
    %v77 = vstv %s76
    %v78 = vadd.f32 %v66, %v77
    %79 = vst.msk [vmem:[#allocation3] sm:$0x1] %vm64, %v78
    %v80 = vld [vmem:[#allocation4] sm:$0x1]
    %81 = vadd.xlane.f32.xlu0 %v51
    %v82 = vpop.xlane.xlu0 %81
    %v83 = vrot.slane %v82, 4
    %v84 = vadd.f32 %v82, %v83
    %v85 = vrot.slane %v84, 2
    %v86 = vadd.f32 %v84, %v85
    %v87 = vrot.slane %v86, 1
    %v88 = vadd.f32 %v86, %v87
    %s89 = vtos %v88
    %v90 = vstv %s89
    %v91 = vadd.f32 %v80, %v90
    %92 = vst.msk [vmem:[#allocation4] sm:$0x1] %vm64, %v91
    // Predicated region
    $region22: #{tpu_custom_call.1} parent=1 // pred_check
      %p93 = pneg %p36
    $region23: #{tpu_custom_call.1} parent=1 // pred_check_branch
      %95 = sbr.rel (%p93) target = $region25
    $region24: #{tpu_custom_call.1} parent=1 // pred_region
      %v96 = vld [vmem:[#allocation2] sm:$0x1]
      %v97 = vsub.f32 %v96, 896.0
      %v98 = vsub.f32 128.0, %v97
      %v99 = vld [vmem:[#allocation3] sm:$0x1]
      %v100 = vsub.f32 0.0, %v99
      %v101 = vld [vmem:[#allocation4] sm:$0x1]
      %v102 = vsub.f32 %v99, %v101
      %v103 = vrcp.pop %v97
      %v104 = vmul.f32 128.0, %v103
      %v105 = vrcp.pop %v98
      %v106 = vmul.f32 128.0, %v105
      %v107 = vmul.f32 %v104, %v100
      %v108 = vmul.f32 %v106, %v102
      %v109 = vadd.f32 %v107, %v108
      %v110 = vrcp.pop 8.0
      %v111 = vmul.f32 %v109, %v110
      %112 = vst.msk [vmem:[#allocation10] sm:$0x1] %vm64, %v111
    $region25: #{tpu_custom_call.1} parent=1 // pred_fallthru
      _
    // Predicated region
    $region26: #{tpu_custom_call.1} parent=1 // pred_check
      _
    $region27: #{tpu_custom_call.1} parent=1 // pred_check_branch
      %114 = sbr.rel (0) target = $region29
    $region28: #{tpu_custom_call.1} parent=1 // pred_region
      %s116 = ssub.s32 16, 16
      %117 = vsyncadd [#allocation7], %s116
      %s119 = sshll.u32 [#allocation10], 4
      %s120 = int_to_ptr.vmem [resolvable:$true] %s119
      %122 = dma.vmem_to_hbm [thread:$0]  %s120, 16, %s2, [#allocation7]
    $region29: #{tpu_custom_call.1} parent=1 // pred_fallthru
      _
    // Predicated region
    $region30: #{tpu_custom_call.1} parent=1 // pred_check
      _
    $region31: #{tpu_custom_call.1} parent=1 // pred_check_branch
      %124 = sbr.rel (0) target = $region33
    $region32: #{tpu_custom_call.1} parent=1 // pred_region
      %125 = dma.done [#allocation7], 16
    $region33: #{tpu_custom_call.1} parent=1 // pred_fallthru
      _
    %126 = vsyncpa [#allocation6], 1
    %127 = vsyncpa [#allocation9], 1
    %128 = vsyncpa [#allocation7], 1

</llo_original>
